<compile_context>
chip_gen: v7x
topology: tpu7x:2x2x1
jax: 0.10.0
libtpu: 0.0.40
codegen_flags: <defaults>
</compile_context>

<pallas_src>
import math
import functools

import jax
import jax.numpy as jnp
from jax import lax
from jax.experimental import pallas as pl
from jax.experimental.pallas import tpu as pltpu

RADIUS = 10.0   # args.radius == module radius default (10)
EPS = 1e-12     # torch.nn.functional.normalize default eps


def _round_up(a, b):
    return ((a + b - 1) // b) * b


def _fused_center_logits_kernel(x_ref, w_ref, logits_ref):
    # x_ref:      (N, D)   full batch (constant block index -> DMA'd once, resident)
    # w_ref:      (TN, D)  raw, un-normalized weight tile for this grid step
    # logits_ref: (N, TN)  output tile of radius * normalize(x) @ normalize(w).T

    # radius * normalize(x): per-row rsqrt on an (N, 1) scalar (EUP), RADIUS folded
    # into that scalar, then a single broadcast multiply over the tiny (N, D) x.
    x = x_ref[...]
    inv_x = lax.rsqrt(jnp.maximum(
        jnp.sum(x * x, axis=-1, keepdims=True), EPS * EPS))
    xs = x * (RADIUS * inv_x)

    # normalize(weight) for this class tile: (TN, 1) rsqrt + broadcast multiply.
    # Upcast is a no-op for f32 weights; for bf16-streamed weights it happens in VMEM.
    w = w_ref[...].astype(jnp.float32)
    inv_w = lax.rsqrt(jnp.maximum(
        jnp.sum(w * w, axis=-1, keepdims=True), EPS * EPS))
    nw = w * inv_w

    # (N, D) x (TN, D), contracting dim 1 of both operands -> (N, TN) on the MXU,
    # no explicit transpose of the weight tile.
    logits_ref[...] = lax.dot_general(
        xs, nw,
        dimension_numbers=(((1,), (1,)), ((), ())),
        preferred_element_type=jnp.float32,
    ).astype(logits_ref.dtype)


@functools.partial(jax.jit, static_argnames=("tn", "stream_bf16"))
def center_loss_forward(x, target, weight, *, tn=2048, stream_bf16=False):
    """Returns (logits, center_loss) matching CenterLoss.forward."""
    N, D = x.shape
    C, _ = weight.shape

    # Pad the class dim so every weight / logits tile is full (no ragged masked
    # stores, no work on undefined data).  tn stays a multiple of 128.
    if C <= tn:
        tn = _round_up(C, 128)
        c_pad = tn
    else:
        tn = _round_up(tn, 128)
        c_pad = _round_up(C, tn)

    w = weight.astype(jnp.bfloat16) if stream_bf16 else weight
    if c_pad != C:
        w = jnp.pad(w, ((0, c_pad - C), (0, 0)))

    grid = (c_pad // tn,)

    cost = pl.CostEstimate(
        flops=2 * N * c_pad * D,
        bytes_accessed=4 * N * D + c_pad * D * w.dtype.itemsize + 4 * N * c_pad,
        transcendentals=c_pad + N,
    )

    logits_padded = pl.pallas_call(
        _fused_center_logits_kernel,
        out_shape=jax.ShapeDtypeStruct((N, c_pad), jnp.float32),
        grid=grid,
        in_specs=[
            pl.BlockSpec((N, D), lambda j: (0, 0)),    # x: constant block, fetched once
            pl.BlockSpec((tn, D), lambda j: (j, 0)),   # weight: streamed tile per step
        ],
        out_specs=pl.BlockSpec((N, tn), lambda j: (0, j)),
        compiler_params=pltpu.CompilerParams(
            dimension_semantics=("parallel",),         # class tiles are independent
        ),
        cost_estimate=cost,
    )(x, w)

    logits = logits_padded[:, :C]

    # Center loss from the already-computed logits (no second pass over the weight):
    #   cos_i = <normalize(x)_i, normalize(W)_{target_i}> = logits[i, target_i] / radius
    # targets are always < C, so padded columns are never read.
    cos = logits[jnp.arange(N), target.astype(jnp.int32)] * (1.0 / RADIUS)
    center_loss = -jnp.mean(cos)
    return logits, center_loss


if __name__ == "__main__":
    FEAT_DIM = 128     # module default 512; small TPU-friendly size
    NUM_CLASS = 1000   # module default 10572; deliberately NOT a multiple of 128
    BATCH = 8

    key = jax.random.PRNGKey(0)
    kx, kt, kw = jax.random.split(key, 3)

    x = jax.random.normal(kx, (BATCH, FEAT_DIM), jnp.float32)
    target = jax.random.randint(kt, (BATCH,), 0, NUM_CLASS, dtype=jnp.int32)
    # deterministic init mirroring reset_parameters(): U(-stdv, stdv), stdv = 1/sqrt(feat_dim)
    stdv = 1.0 / math.sqrt(FEAT_DIM)
    weight = jax.random.uniform(kw, (NUM_CLASS, FEAT_DIM), jnp.float32, -stdv, stdv)

    logits, loss = center_loss_forward(x, target, weight)
    jax.block_until_ready((logits, loss))

    # plain-JAX reference for sanity
    def ref(x, target, weight):
        nw = weight / jnp.maximum(jnp.linalg.norm(weight, axis=1, keepdims=True), EPS)
        nx = x / jnp.maximum(jnp.linalg.norm(x, axis=1, keepdims=True), EPS)
        cos = jnp.sum(nx * nw[target], axis=1)
        return (nx * RADIUS) @ nw.T, -jnp.mean(cos)

    ref_logits, ref_loss = ref(x, target, weight)
    assert logits.shape == (BATCH, NUM_CLASS), "logits shape mismatch"
    assert jnp.allclose(logits, ref_logits, atol=1e-5, rtol=1e-5), "logits mismatch"
    assert jnp.allclose(loss, ref_loss, atol=1e-5, rtol=1e-5), "center loss mismatch"
    print("KERNEL_OK")
</pallas_src>

<mosaic_0001>
module attributes {stable_mosaic.version = 11 : i64} {
  func.func @_fused_center_logits_kernel(%arg0: i32, %arg1: memref<8x128xf32, #tpu.memory_space<vmem>>, %arg2: memref<1024x128xf32, #tpu.memory_space<vmem>>, %arg3: memref<8x1024xf32, #tpu.memory_space<vmem>>) attributes {dimension_semantics = [#tpu.dimension_semantics<parallel>], iteration_bounds = array<i64: 1>, scalar_prefetch = 0 : i64, scratch_operands = 0 : i64, tpu.core_type = #tpu.core_type<tc>, window_params = [{pipeline_mode = #tpu.pipeline_mode<synchronous>, transform_indices = @transform_0, window_bounds = array<i64: 8, 128>}, {transform_indices = @transform_1, window_bounds = array<i64: 1024, 128>}, {transform_indices = @transform_2, window_bounds = array<i64: 8, 1024>}]} {
    %c0 = arith.constant 0 : index
    %c0_0 = arith.constant 0 : index
    %0 = vector.load %arg1[%c0, %c0_0] : memref<8x128xf32, #tpu.memory_space<vmem>>, vector<8x128xf32>
    %1 = arith.mulf %0, %0 : vector<8x128xf32>
    %cst = arith.constant dense<0.000000e+00> : vector<8xf32>
    %2 = vector.multi_reduction <add>, %1, %cst [1] : vector<8x128xf32> to vector<8xf32>
    %3 = vector.shape_cast %2 : vector<8xf32> to vector<8x1xf32>
    %cst_1 = arith.constant 1.000000e-24 : f32
    %4 = vector.broadcast %cst_1 : f32 to vector<8x1xf32>
    %5 = arith.maximumf %3, %4 : vector<8x1xf32>
    %6 = math.rsqrt %5 : vector<8x1xf32>
    %cst_2 = arith.constant 1.000000e+01 : f32
    %7 = vector.broadcast %cst_2 : f32 to vector<8x1xf32>
    %8 = arith.mulf %7, %6 : vector<8x1xf32>
    %9 = vector.broadcast %8 : vector<8x1xf32> to vector<8x128xf32>
    %10 = arith.mulf %0, %9 : vector<8x128xf32>
    %c0_3 = arith.constant 0 : index
    %c0_4 = arith.constant 0 : index
    %11 = vector.load %arg2[%c0_3, %c0_4] : memref<1024x128xf32, #tpu.memory_space<vmem>>, vector<1024x128xf32>
    %12 = arith.mulf %11, %11 : vector<1024x128xf32>
    %cst_5 = arith.constant dense<0.000000e+00> : vector<1024xf32>
    %13 = vector.multi_reduction <add>, %12, %cst_5 [1] : vector<1024x128xf32> to vector<1024xf32>
    %14 = vector.shape_cast %13 : vector<1024xf32> to vector<1024x1xf32>
    %cst_6 = arith.constant 1.000000e-24 : f32
    %15 = vector.broadcast %cst_6 : f32 to vector<1024x1xf32>
    %16 = arith.maximumf %14, %15 : vector<1024x1xf32>
    %17 = math.rsqrt %16 : vector<1024x1xf32>
    %18 = vector.broadcast %17 : vector<1024x1xf32> to vector<1024x128xf32>
    %19 = arith.mulf %11, %18 : vector<1024x128xf32>
    %cst_7 = arith.constant dense<0.000000e+00> : vector<8x1024xf32>
    %20 = tpu.matmul %10, %19, %cst_7 {dimension_numbers = #tpu.dot_dimension_numbers<[1], [1], [0], [0], [0, 0, 1, 0], [], []>} : vector<8x128xf32>, vector<1024x128xf32>, vector<8x1024xf32> -> vector<8x1024xf32>
    %c0_8 = arith.constant 0 : index
    %c0_9 = arith.constant 0 : index
    %21 = vector.load %arg3[%c0_8, %c0_9] : memref<8x1024xf32, #tpu.memory_space<vmem>>, vector<8x1024xf32>
    tpu.vector_store %arg3[%c0_8, %c0_9], %20 {strides = array<i32>} : memref<8x1024xf32, #tpu.memory_space<vmem>>, vector<8x1024xf32>,
    return
  }
  func.func @transform_0(%arg0: i32) -> (i32, i32) {
    %c0_i32 = arith.constant 0 : i32
    %c0_i32_0 = arith.constant 0 : i32
    %c0_i32_1 = arith.constant 0 : i32
    return %c0_i32, %c0_i32_0 : i32, i32
  }
  func.func @transform_1(%arg0: i32) -> (i32, i32) {
    %c0_i32 = arith.constant 0 : i32
    %c0_i32_0 = arith.constant 0 : i32
    return %arg0, %c0_i32 : i32, i32
  }
  func.func @transform_2(%arg0: i32) -> (i32, i32) {
    %c0_i32 = arith.constant 0 : i32
    %c0_i32_0 = arith.constant 0 : i32
    return %c0_i32, %arg0 : i32, i32
  }
}

</mosaic_0001>

<llo_original>
// kernel: center_loss_forward.1
$region0: #{center_loss_forward.1}
  #allocation0 [shape = 'u32[]', space=smem, size = 0x4, offset = 0x4, fixed_abs, tag = 'smem constant byte address 0x4 - core index']
  #allocation1 [shape = 'u32[144,128]{1,0:T(1,128)}', space=vmem, size = 0x12000, scoped, tag = 'internal scratch']
  %s0 = inlined_call_operand.vmem [shape: f32[8,128], index: 0, kind: input, shape index: {}]
  %s1 = inlined_call_operand.vmem [shape: f32[1024,128], index: 1, kind: input, shape index: {}]
  %s2 = inlined_call_operand.vmem [shape: f32[8,1024], index: 2, kind: output, shape index: {}]
  %s3 = sld [smem:[#allocation0]]
  $region18: #{center_loss_forward.1} parent=0
    _
  %s5 = ssub.s32 1, %s3
  %s6 = scalar_select 0, %s5, %s3
  // Predicated region
  $region2: #{center_loss_forward.1} parent=0 // pred_check
    _
  $region3: #{center_loss_forward.1} parent=0 // pred_check_branch
    %8 = sbr.rel (0) target = $region5
  $region4: #{center_loss_forward.1} parent=0 // pred_region
    _
  $region5: #{center_loss_forward.1} parent=0 // pred_fallthru
    _
  // Predicated region
  $region6: #{center_loss_forward.1} parent=0 // pred_check
    _
  $region7: #{center_loss_forward.1} parent=0 // pred_check_branch
    %10 = sbr.rel (0) target = $region9
  $region8: #{center_loss_forward.1} parent=0 // pred_region
    _
  $region9: #{center_loss_forward.1} parent=0 // pred_fallthru
    _
  %v11 = vld [vmem:[%s0] sm:$0xff]
  %v12 = vmul.f32 %v11, %v11
  %13 = vadd.xlane.f32.xlu0 %v12
  %v14 = vpop.xlane.xlu0 %13
  %v15 = vmax.f32 %v14, 1e-24
  %v16 = vrsqrt.pop %v15
  %v17 = vmul.f32 %v16, 10.0
  %v18 = vmul.f32 %v11, %v17
  %v19 = vld [vmem:[%s1] sm:$0xff]
  %v20 = vld [vmem:[%s1 + $0x8] sm:$0xff]
  %v21 = vld [vmem:[%s1 + $0x10] sm:$0xff]
  %v22 = vld [vmem:[%s1 + $0x18] sm:$0xff]
  %v23 = vld [vmem:[%s1 + $0x20] sm:$0xff]
  %v24 = vld [vmem:[%s1 + $0x28] sm:$0xff]
  %v25 = vld [vmem:[%s1 + $0x30] sm:$0xff]
  %v26 = vld [vmem:[%s1 + $0x38] sm:$0xff]
  %v27 = vld [vmem:[%s1 + $0x40] sm:$0xff]
  %v28 = vld [vmem:[%s1 + $0x48] sm:$0xff]
  %v29 = vld [vmem:[%s1 + $0x50] sm:$0xff]
  %v30 = vld [vmem:[%s1 + $0x58] sm:$0xff]
  %v31 = vld [vmem:[%s1 + $0x60] sm:$0xff]
  %v32 = vld [vmem:[%s1 + $0x68] sm:$0xff]
  %v33 = vld [vmem:[%s1 + $0x70] sm:$0xff]
  %v34 = vld [vmem:[%s1 + $0x78] sm:$0xff]
  %v35 = vld [vmem:[%s1 + $0x80] sm:$0xff]
  %v36 = vld [vmem:[%s1 + $0x88] sm:$0xff]
  %v37 = vld [vmem:[%s1 + $0x90] sm:$0xff]
  %v38 = vld [vmem:[%s1 + $0x98] sm:$0xff]
  %v39 = vld [vmem:[%s1 + $0xa0] sm:$0xff]
  %v40 = vld [vmem:[%s1 + $0xa8] sm:$0xff]
  %v41 = vld [vmem:[%s1 + $0xb0] sm:$0xff]
  %v42 = vld [vmem:[%s1 + $0xb8] sm:$0xff]
  %v43 = vld [vmem:[%s1 + $0xc0] sm:$0xff]
  %v44 = vld [vmem:[%s1 + $0xc8] sm:$0xff]
  %v45 = vld [vmem:[%s1 + $0xd0] sm:$0xff]
  %v46 = vld [vmem:[%s1 + $0xd8] sm:$0xff]
  %v47 = vld [vmem:[%s1 + $0xe0] sm:$0xff]
  %v48 = vld [vmem:[%s1 + $0xe8] sm:$0xff]
  %v49 = vld [vmem:[%s1 + $0xf0] sm:$0xff]
  %v50 = vld [vmem:[%s1 + $0xf8] sm:$0xff]
  %v51 = vld [vmem:[%s1 + $0x100] sm:$0xff]
  %v52 = vld [vmem:[%s1 + $0x108] sm:$0xff]
  %v53 = vld [vmem:[%s1 + $0x110] sm:$0xff]
  %v54 = vld [vmem:[%s1 + $0x118] sm:$0xff]
  %v55 = vld [vmem:[%s1 + $0x120] sm:$0xff]
  %v56 = vld [vmem:[%s1 + $0x128] sm:$0xff]
  %v57 = vld [vmem:[%s1 + $0x130] sm:$0xff]
  %v58 = vld [vmem:[%s1 + $0x138] sm:$0xff]
  %v59 = vld [vmem:[%s1 + $0x140] sm:$0xff]
  %v60 = vld [vmem:[%s1 + $0x148] sm:$0xff]
  %v61 = vld [vmem:[%s1 + $0x150] sm:$0xff]
  %v62 = vld [vmem:[%s1 + $0x158] sm:$0xff]
  %v63 = vld [vmem:[%s1 + $0x160] sm:$0xff]
  %v64 = vld [vmem:[%s1 + $0x168] sm:$0xff]
  %v65 = vld [vmem:[%s1 + $0x170] sm:$0xff]
  %v66 = vld [vmem:[%s1 + $0x178] sm:$0xff]
  %v67 = vld [vmem:[%s1 + $0x180] sm:$0xff]
  %v68 = vld [vmem:[%s1 + $0x188] sm:$0xff]
  %v69 = vld [vmem:[%s1 + $0x190] sm:$0xff]
  %v70 = vld [vmem:[%s1 + $0x198] sm:$0xff]
  %v71 = vld [vmem:[%s1 + $0x1a0] sm:$0xff]
  %v72 = vld [vmem:[%s1 + $0x1a8] sm:$0xff]
  %v73 = vld [vmem:[%s1 + $0x1b0] sm:$0xff]
  %v74 = vld [vmem:[%s1 + $0x1b8] sm:$0xff]
  %v75 = vld [vmem:[%s1 + $0x1c0] sm:$0xff]
  %v76 = vld [vmem:[%s1 + $0x1c8] sm:$0xff]
  %v77 = vld [vmem:[%s1 + $0x1d0] sm:$0xff]
  %v78 = vld [vmem:[%s1 + $0x1d8] sm:$0xff]
  %v79 = vld [vmem:[%s1 + $0x1e0] sm:$0xff]
  %v80 = vld [vmem:[%s1 + $0x1e8] sm:$0xff]
  %v81 = vld [vmem:[%s1 + $0x1f0] sm:$0xff]
  %v82 = vld [vmem:[%s1 + $0x1f8] sm:$0xff]
  %v83 = vld [vmem:[%s1 + $0x200] sm:$0xff]
  %v84 = vld [vmem:[%s1 + $0x208] sm:$0xff]
  %v85 = vld [vmem:[%s1 + $0x210] sm:$0xff]
  %v86 = vld [vmem:[%s1 + $0x218] sm:$0xff]
  %v87 = vld [vmem:[%s1 + $0x220] sm:$0xff]
  %v88 = vld [vmem:[%s1 + $0x228] sm:$0xff]
  %v89 = vld [vmem:[%s1 + $0x230] sm:$0xff]
  %v90 = vld [vmem:[%s1 + $0x238] sm:$0xff]
  %v91 = vld [vmem:[%s1 + $0x240] sm:$0xff]
  %v92 = vld [vmem:[%s1 + $0x248] sm:$0xff]
  %v93 = vld [vmem:[%s1 + $0x250] sm:$0xff]
  %v94 = vld [vmem:[%s1 + $0x258] sm:$0xff]
  %v95 = vld [vmem:[%s1 + $0x260] sm:$0xff]
  %v96 = vld [vmem:[%s1 + $0x268] sm:$0xff]
  %v97 = vld [vmem:[%s1 + $0x270] sm:$0xff]
  %v98 = vld [vmem:[%s1 + $0x278] sm:$0xff]
  %v99 = vld [vmem:[%s1 + $0x280] sm:$0xff]
  %v100 = vld [vmem:[%s1 + $0x288] sm:$0xff]
  %v101 = vld [vmem:[%s1 + $0x290] sm:$0xff]
  %v102 = vld [vmem:[%s1 + $0x298] sm:$0xff]
  %v103 = vld [vmem:[%s1 + $0x2a0] sm:$0xff]
  %v104 = vld [vmem:[%s1 + $0x2a8] sm:$0xff]
  %v105 = vld [vmem:[%s1 + $0x2b0] sm:$0xff]
  %v106 = vld [vmem:[%s1 + $0x2b8] sm:$0xff]
  %v107 = vld [vmem:[%s1 + $0x2c0] sm:$0xff]
  %v108 = vld [vmem:[%s1 + $0x2c8] sm:$0xff]
  %v109 = vld [vmem:[%s1 + $0x2d0] sm:$0xff]
  %v110 = vld [vmem:[%s1 + $0x2d8] sm:$0xff]
  %v111 = vld [vmem:[%s1 + $0x2e0] sm:$0xff]
  %v112 = vld [vmem:[%s1 + $0x2e8] sm:$0xff]
  %v113 = vld [vmem:[%s1 + $0x2f0] sm:$0xff]
  %v114 = vld [vmem:[%s1 + $0x2f8] sm:$0xff]
  %v115 = vld [vmem:[%s1 + $0x300] sm:$0xff]
  %v116 = vld [vmem:[%s1 + $0x308] sm:$0xff]
  %v117 = vld [vmem:[%s1 + $0x310] sm:$0xff]
  %v118 = vld [vmem:[%s1 + $0x318] sm:$0xff]
  %v119 = vld [vmem:[%s1 + $0x320] sm:$0xff]
  %v120 = vld [vmem:[%s1 + $0x328] sm:$0xff]
  %v121 = vld [vmem:[%s1 + $0x330] sm:$0xff]
  %v122 = vld [vmem:[%s1 + $0x338] sm:$0xff]
  %v123 = vld [vmem:[%s1 + $0x340] sm:$0xff]
  %v124 = vld [vmem:[%s1 + $0x348] sm:$0xff]
  %v125 = vld [vmem:[%s1 + $0x350] sm:$0xff]
  %v126 = vld [vmem:[%s1 + $0x358] sm:$0xff]
  %v127 = vld [vmem:[%s1 + $0x360] sm:$0xff]
  %v128 = vld [vmem:[%s1 + $0x368] sm:$0xff]
  %v129 = vld [vmem:[%s1 + $0x370] sm:$0xff]
  %v130 = vld [vmem:[%s1 + $0x378] sm:$0xff]
  %v131 = vld [vmem:[%s1 + $0x380] sm:$0xff]
  %v132 = vld [vmem:[%s1 + $0x388] sm:$0xff]
  %v133 = vld [vmem:[%s1 + $0x390] sm:$0xff]
  %v134 = vld [vmem:[%s1 + $0x398] sm:$0xff]
  %v135 = vld [vmem:[%s1 + $0x3a0] sm:$0xff]
  %v136 = vld [vmem:[%s1 + $0x3a8] sm:$0xff]
  %v137 = vld [vmem:[%s1 + $0x3b0] sm:$0xff]
  %v138 = vld [vmem:[%s1 + $0x3b8] sm:$0xff]
  %v139 = vld [vmem:[%s1 + $0x3c0] sm:$0xff]
  %v140 = vld [vmem:[%s1 + $0x3c8] sm:$0xff]
  %v141 = vld [vmem:[%s1 + $0x3d0] sm:$0xff]
  %v142 = vld [vmem:[%s1 + $0x3d8] sm:$0xff]
  %v143 = vld [vmem:[%s1 + $0x3e0] sm:$0xff]
  %v144 = vld [vmem:[%s1 + $0x3e8] sm:$0xff]
  %v145 = vld [vmem:[%s1 + $0x3f0] sm:$0xff]
  %v146 = vld [vmem:[%s1 + $0x3f8] sm:$0xff]
  %v147 = vmul.f32 %v19, %v19
  %v148 = vmul.f32 %v20, %v20
  %v149 = vmul.f32 %v21, %v21
  %v150 = vmul.f32 %v22, %v22
  %v151 = vmul.f32 %v23, %v23
  %v152 = vmul.f32 %v24, %v24
  %v153 = vmul.f32 %v25, %v25
  %v154 = vmul.f32 %v26, %v26
  %v155 = vmul.f32 %v27, %v27
  %v156 = vmul.f32 %v28, %v28
  %v157 = vmul.f32 %v29, %v29
  %v158 = vmul.f32 %v30, %v30
  %v159 = vmul.f32 %v31, %v31
  %v160 = vmul.f32 %v32, %v32
  %v161 = vmul.f32 %v33, %v33
  %v162 = vmul.f32 %v34, %v34
  %v163 = vmul.f32 %v35, %v35
  %v164 = vmul.f32 %v36, %v36
  %v165 = vmul.f32 %v37, %v37
  %v166 = vmul.f32 %v38, %v38
  %v167 = vmul.f32 %v39, %v39
  %v168 = vmul.f32 %v40, %v40
  %v169 = vmul.f32 %v41, %v41
  %v170 = vmul.f32 %v42, %v42
  %v171 = vmul.f32 %v43, %v43
  %v172 = vmul.f32 %v44, %v44
  %v173 = vmul.f32 %v45, %v45
  %v174 = vmul.f32 %v46, %v46
  %v175 = vmul.f32 %v47, %v47
  %v176 = vmul.f32 %v48, %v48
  %v177 = vmul.f32 %v49, %v49
  %v178 = vmul.f32 %v50, %v50
  %v179 = vmul.f32 %v51, %v51
  %v180 = vmul.f32 %v52, %v52
  %v181 = vmul.f32 %v53, %v53
  %v182 = vmul.f32 %v54, %v54
  %v183 = vmul.f32 %v55, %v55
  %v184 = vmul.f32 %v56, %v56
  %v185 = vmul.f32 %v57, %v57
  %v186 = vmul.f32 %v58, %v58
  %v187 = vmul.f32 %v59, %v59
  %v188 = vmul.f32 %v60, %v60
  %v189 = vmul.f32 %v61, %v61
  %v190 = vmul.f32 %v62, %v62
  %v191 = vmul.f32 %v63, %v63
  %v192 = vmul.f32 %v64, %v64
  %v193 = vmul.f32 %v65, %v65
  %v194 = vmul.f32 %v66, %v66
  %v195 = vmul.f32 %v67, %v67
  %v196 = vmul.f32 %v68, %v68
  %v197 = vmul.f32 %v69, %v69
  %v198 = vmul.f32 %v70, %v70
  %v199 = vmul.f32 %v71, %v71
  %v200 = vmul.f32 %v72, %v72
  %v201 = vmul.f32 %v73, %v73
  %v202 = vmul.f32 %v74, %v74
  %v203 = vmul.f32 %v75, %v75
  %v204 = vmul.f32 %v76, %v76
  %v205 = vmul.f32 %v77, %v77
  %v206 = vmul.f32 %v78, %v78
  %v207 = vmul.f32 %v79, %v79
  %v208 = vmul.f32 %v80, %v80
  %v209 = vmul.f32 %v81, %v81
  %v210 = vmul.f32 %v82, %v82
  %v211 = vmul.f32 %v83, %v83
  %v212 = vmul.f32 %v84, %v84
  %v213 = vmul.f32 %v85, %v85
  %v214 = vmul.f32 %v86, %v86
  %v215 = vmul.f32 %v87, %v87
  %v216 = vmul.f32 %v88, %v88
  %v217 = vmul.f32 %v89, %v89
  %v218 = vmul.f32 %v90, %v90
  %v219 = vmul.f32 %v91, %v91
  %v220 = vmul.f32 %v92, %v92
  %v221 = vmul.f32 %v93, %v93
  %v222 = vmul.f32 %v94, %v94
  %v223 = vmul.f32 %v95, %v95
  %v224 = vmul.f32 %v96, %v96
  %v225 = vmul.f32 %v97, %v97
  %v226 = vmul.f32 %v98, %v98
  %v227 = vmul.f32 %v99, %v99
  %v228 = vmul.f32 %v100, %v100
  %v229 = vmul.f32 %v101, %v101
  %v230 = vmul.f32 %v102, %v102
  %v231 = vmul.f32 %v103, %v103
  %v232 = vmul.f32 %v104, %v104
  %v233 = vmul.f32 %v105, %v105
  %v234 = vmul.f32 %v106, %v106
  %v235 = vmul.f32 %v107, %v107
  %v236 = vmul.f32 %v108, %v108
  %v237 = vmul.f32 %v109, %v109
  %v238 = vmul.f32 %v110, %v110
  %v239 = vmul.f32 %v111, %v111
  %v240 = vmul.f32 %v112, %v112
  %v241 = vmul.f32 %v113, %v113
  %v242 = vmul.f32 %v114, %v114
  %v243 = vmul.f32 %v115, %v115
  %v244 = vmul.f32 %v116, %v116
  %v245 = vmul.f32 %v117, %v117
  %v246 = vmul.f32 %v118, %v118
  %v247 = vmul.f32 %v119, %v119
  %v248 = vmul.f32 %v120, %v120
  %v249 = vmul.f32 %v121, %v121
  %v250 = vmul.f32 %v122, %v122
  %v251 = vmul.f32 %v123, %v123
  %v252 = vmul.f32 %v124, %v124
  %v253 = vmul.f32 %v125, %v125
  %v254 = vmul.f32 %v126, %v126
  %v255 = vmul.f32 %v127, %v127
  %v256 = vmul.f32 %v128, %v128
  %v257 = vmul.f32 %v129, %v129
  %v258 = vmul.f32 %v130, %v130
  %v259 = vmul.f32 %v131, %v131
  %v260 = vmul.f32 %v132, %v132
  %v261 = vmul.f32 %v133, %v133
  %v262 = vmul.f32 %v134, %v134
  %v263 = vmul.f32 %v135, %v135
  %v264 = vmul.f32 %v136, %v136
  %v265 = vmul.f32 %v137, %v137
  %v266 = vmul.f32 %v138, %v138
  %v267 = vmul.f32 %v139, %v139
  %v268 = vmul.f32 %v140, %v140
  %v269 = vmul.f32 %v141, %v141
  %v270 = vmul.f32 %v142, %v142
  %v271 = vmul.f32 %v143, %v143
  %v272 = vmul.f32 %v144, %v144
  %v273 = vmul.f32 %v145, %v145
  %v274 = vmul.f32 %v146, %v146
  %275 = vadd.xlane.f32.xlu0 %v147
  %v276 = vpop.xlane.xlu0 %275
  %277 = vadd.xlane.f32.xlu0 %v148
  %v278 = vpop.xlane.xlu0 %277
  %279 = vadd.xlane.f32.xlu0 %v149
  %v280 = vpop.xlane.xlu0 %279
  %281 = vadd.xlane.f32.xlu0 %v150
  %v282 = vpop.xlane.xlu0 %281
  %283 = vadd.xlane.f32.xlu0 %v151
  %v284 = vpop.xlane.xlu0 %283
  %285 = vadd.xlane.f32.xlu0 %v152
  %v286 = vpop.xlane.xlu0 %285
  %287 = vadd.xlane.f32.xlu0 %v153
  %v288 = vpop.xlane.xlu0 %287
  %289 = vadd.xlane.f32.xlu0 %v154
  %v290 = vpop.xlane.xlu0 %289
  %291 = vadd.xlane.f32.xlu0 %v155
  %v292 = vpop.xlane.xlu0 %291
  %293 = vadd.xlane.f32.xlu0 %v156
  %v294 = vpop.xlane.xlu0 %293
  %295 = vadd.xlane.f32.xlu0 %v157
  %v296 = vpop.xlane.xlu0 %295
  %297 = vadd.xlane.f32.xlu0 %v158
  %v298 = vpop.xlane.xlu0 %297
  %299 = vadd.xlane.f32.xlu0 %v159
  %v300 = vpop.xlane.xlu0 %299
  %301 = vadd.xlane.f32.xlu0 %v160
  %v302 = vpop.xlane.xlu0 %301
  %303 = vadd.xlane.f32.xlu0 %v161
  %v304 = vpop.xlane.xlu0 %303
  %305 = vadd.xlane.f32.xlu0 %v162
  %v306 = vpop.xlane.xlu0 %305
  %307 = vadd.xlane.f32.xlu0 %v163
  %v308 = vpop.xlane.xlu0 %307
  %309 = vadd.xlane.f32.xlu0 %v164
  %v310 = vpop.xlane.xlu0 %309
  %311 = vadd.xlane.f32.xlu0 %v165
  %v312 = vpop.xlane.xlu0 %311
  %313 = vadd.xlane.f32.xlu0 %v166
  %v314 = vpop.xlane.xlu0 %313
  %315 = vadd.xlane.f32.xlu0 %v167
  %v316 = vpop.xlane.xlu0 %315
  %317 = vadd.xlane.f32.xlu0 %v168
  %v318 = vpop.xlane.xlu0 %317
  %319 = vadd.xlane.f32.xlu0 %v169
  %v320 = vpop.xlane.xlu0 %319
  %321 = vadd.xlane.f32.xlu0 %v170
  %v322 = vpop.xlane.xlu0 %321
  %323 = vadd.xlane.f32.xlu0 %v171
  %v324 = vpop.xlane.xlu0 %323
  %325 = vadd.xlane.f32.xlu0 %v172
  %v326 = vpop.xlane.xlu0 %325
  %327 = vadd.xlane.f32.xlu0 %v173
  %v328 = vpop.xlane.xlu0 %327
  %329 = vadd.xlane.f32.xlu0 %v174
  %v330 = vpop.xlane.xlu0 %329
  %331 = vadd.xlane.f32.xlu0 %v175
  %v332 = vpop.xlane.xlu0 %331
  %333 = vadd.xlane.f32.xlu0 %v176
  %v334 = vpop.xlane.xlu0 %333
  %335 = vadd.xlane.f32.xlu0 %v177
  %v336 = vpop.xlane.xlu0 %335
  %337 = vadd.xlane.f32.xlu0 %v178
  %v338 = vpop.xlane.xlu0 %337
  %339 = vadd.xlane.f32.xlu0 %v179
  %v340 = vpop.xlane.xlu0 %339
  %341 = vadd.xlane.f32.xlu0 %v180
  %v342 = vpop.xlane.xlu0 %341
  %343 = vadd.xlane.f32.xlu0 %v181
  %v344 = vpop.xlane.xlu0 %343
  %345 = vadd.xlane.f32.xlu0 %v182
  %v346 = vpop.xlane.xlu0 %345
  %347 = vadd.xlane.f32.xlu0 %v183
  %v348 = vpop.xlane.xlu0 %347
  %349 = vadd.xlane.f32.xlu0 %v184
  %v350 = vpop.xlane.xlu0 %349
  %351 = vadd.xlane.f32.xlu0 %v185
  %v352 = vpop.xlane.xlu0 %351
  %353 = vadd.xlane.f32.xlu0 %v186
  %v354 = vpop.xlane.xlu0 %353
  %355 = vadd.xlane.f32.xlu0 %v187
  %v356 = vpop.xlane.xlu0 %355
  %357 = vadd.xlane.f32.xlu0 %v188
  %v358 = vpop.xlane.xlu0 %357
  %359 = vadd.xlane.f32.xlu0 %v189
  %v360 = vpop.xlane.xlu0 %359
  %361 = vadd.xlane.f32.xlu0 %v190
  %v362 = vpop.xlane.xlu0 %361
  %363 = vadd.xlane.f32.xlu0 %v191
  %v364 = vpop.xlane.xlu0 %363
  %365 = vadd.xlane.f32.xlu0 %v192
  %v366 = vpop.xlane.xlu0 %365
  %367 = vadd.xlane.f32.xlu0 %v193
  %v368 = vpop.xlane.xlu0 %367
  %369 = vadd.xlane.f32.xlu0 %v194
  %v370 = vpop.xlane.xlu0 %369
  %371 = vadd.xlane.f32.xlu0 %v195
  %v372 = vpop.xlane.xlu0 %371
  %373 = vadd.xlane.f32.xlu0 %v196
  %v374 = vpop.xlane.xlu0 %373
  %375 = vadd.xlane.f32.xlu0 %v197
  %v376 = vpop.xlane.xlu0 %375
  %377 = vadd.xlane.f32.xlu0 %v198
  %v378 = vpop.xlane.xlu0 %377
  %379 = vadd.xlane.f32.xlu0 %v199
  %v380 = vpop.xlane.xlu0 %379
  %381 = vadd.xlane.f32.xlu0 %v200
  %v382 = vpop.xlane.xlu0 %381
  %383 = vadd.xlane.f32.xlu0 %v201
  %v384 = vpop.xlane.xlu0 %383
  %385 = vadd.xlane.f32.xlu0 %v202
  %v386 = vpop.xlane.xlu0 %385
  %387 = vadd.xlane.f32.xlu0 %v203
  %v388 = vpop.xlane.xlu0 %387
  %389 = vadd.xlane.f32.xlu0 %v204
  %v390 = vpop.xlane.xlu0 %389
  %391 = vadd.xlane.f32.xlu0 %v205
  %v392 = vpop.xlane.xlu0 %391
  %393 = vadd.xlane.f32.xlu0 %v206
  %v394 = vpop.xlane.xlu0 %393
  %395 = vadd.xlane.f32.xlu0 %v207
  %v396 = vpop.xlane.xlu0 %395
  %397 = vadd.xlane.f32.xlu0 %v208
  %v398 = vpop.xlane.xlu0 %397
  %399 = vadd.xlane.f32.xlu0 %v209
  %v400 = vpop.xlane.xlu0 %399
  %401 = vadd.xlane.f32.xlu0 %v210
  %v402 = vpop.xlane.xlu0 %401
  %403 = vadd.xlane.f32.xlu0 %v211
  %v404 = vpop.xlane.xlu0 %403
  %405 = vadd.xlane.f32.xlu0 %v212
  %v406 = vpop.xlane.xlu0 %405
  %407 = vadd.xlane.f32.xlu0 %v213
  %v408 = vpop.xlane.xlu0 %407
  %409 = vadd.xlane.f32.xlu0 %v214
  %v410 = vpop.xlane.xlu0 %409
  %411 = vadd.xlane.f32.xlu0 %v215
  %v412 = vpop.xlane.xlu0 %411
  %413 = vadd.xlane.f32.xlu0 %v216
  %v414 = vpop.xlane.xlu0 %413
  %415 = vadd.xlane.f32.xlu0 %v217
  %v416 = vpop.xlane.xlu0 %415
  %417 = vadd.xlane.f32.xlu0 %v218
  %v418 = vpop.xlane.xlu0 %417
  %419 = vadd.xlane.f32.xlu0 %v219
  %v420 = vpop.xlane.xlu0 %419
  %421 = vadd.xlane.f32.xlu0 %v220
  %v422 = vpop.xlane.xlu0 %421
  %423 = vadd.xlane.f32.xlu0 %v221
  %v424 = vpop.xlane.xlu0 %423
  %425 = vadd.xlane.f32.xlu0 %v222
  %v426 = vpop.xlane.xlu0 %425
  %427 = vadd.xlane.f32.xlu0 %v223
  %v428 = vpop.xlane.xlu0 %427
  %429 = vadd.xlane.f32.xlu0 %v224
  %v430 = vpop.xlane.xlu0 %429
  %431 = vadd.xlane.f32.xlu0 %v225
  %v432 = vpop.xlane.xlu0 %431
  %433 = vadd.xlane.f32.xlu0 %v226
  %v434 = vpop.xlane.xlu0 %433
  %435 = vadd.xlane.f32.xlu0 %v227
  %v436 = vpop.xlane.xlu0 %435
  %437 = vadd.xlane.f32.xlu0 %v228
  %v438 = vpop.xlane.xlu0 %437
  %439 = vadd.xlane.f32.xlu0 %v229
  %v440 = vpop.xlane.xlu0 %439
  %441 = vadd.xlane.f32.xlu0 %v230
  %v442 = vpop.xlane.xlu0 %441
  %443 = vadd.xlane.f32.xlu0 %v231
  %v444 = vpop.xlane.xlu0 %443
  %445 = vadd.xlane.f32.xlu0 %v232
  %v446 = vpop.xlane.xlu0 %445
  %447 = vadd.xlane.f32.xlu0 %v233
  %v448 = vpop.xlane.xlu0 %447
  %449 = vadd.xlane.f32.xlu0 %v234
  %v450 = vpop.xlane.xlu0 %449
  %451 = vadd.xlane.f32.xlu0 %v235
  %v452 = vpop.xlane.xlu0 %451
  %453 = vadd.xlane.f32.xlu0 %v236
  %v454 = vpop.xlane.xlu0 %453
  %455 = vadd.xlane.f32.xlu0 %v237
  %v456 = vpop.xlane.xlu0 %455
  %457 = vadd.xlane.f32.xlu0 %v238
  %v458 = vpop.xlane.xlu0 %457
  %459 = vadd.xlane.f32.xlu0 %v239
  %v460 = vpop.xlane.xlu0 %459
  %461 = vadd.xlane.f32.xlu0 %v240
  %v462 = vpop.xlane.xlu0 %461
  %463 = vadd.xlane.f32.xlu0 %v241
  %v464 = vpop.xlane.xlu0 %463
  %465 = vadd.xlane.f32.xlu0 %v242
  %v466 = vpop.xlane.xlu0 %465
  %467 = vadd.xlane.f32.xlu0 %v243
  %v468 = vpop.xlane.xlu0 %467
  %469 = vadd.xlane.f32.xlu0 %v244
  %v470 = vpop.xlane.xlu0 %469
  %471 = vadd.xlane.f32.xlu0 %v245
  %v472 = vpop.xlane.xlu0 %471
  %473 = vadd.xlane.f32.xlu0 %v246
  %v474 = vpop.xlane.xlu0 %473
  %475 = vadd.xlane.f32.xlu0 %v247
  %v476 = vpop.xlane.xlu0 %475
  %477 = vadd.xlane.f32.xlu0 %v248
  %v478 = vpop.xlane.xlu0 %477
  %479 = vadd.xlane.f32.xlu0 %v249
  %v480 = vpop.xlane.xlu0 %479
  %481 = vadd.xlane.f32.xlu0 %v250
  %v482 = vpop.xlane.xlu0 %481
  %483 = vadd.xlane.f32.xlu0 %v251
  %v484 = vpop.xlane.xlu0 %483
  %485 = vadd.xlane.f32.xlu0 %v252
  %v486 = vpop.xlane.xlu0 %485
  %487 = vadd.xlane.f32.xlu0 %v253
  %v488 = vpop.xlane.xlu0 %487
  %489 = vadd.xlane.f32.xlu0 %v254
  %v490 = vpop.xlane.xlu0 %489
  %491 = vadd.xlane.f32.xlu0 %v255
  %v492 = vpop.xlane.xlu0 %491
  %493 = vadd.xlane.f32.xlu0 %v256
  %v494 = vpop.xlane.xlu0 %493
  %495 = vadd.xlane.f32.xlu0 %v257
  %v496 = vpop.xlane.xlu0 %495
  %497 = vadd.xlane.f32.xlu0 %v258
  %v498 = vpop.xlane.xlu0 %497
  %499 = vadd.xlane.f32.xlu0 %v259
  %v500 = vpop.xlane.xlu0 %499
  %501 = vadd.xlane.f32.xlu0 %v260
  %v502 = vpop.xlane.xlu0 %501
  %503 = vadd.xlane.f32.xlu0 %v261
  %v504 = vpop.xlane.xlu0 %503
  %505 = vadd.xlane.f32.xlu0 %v262
  %v506 = vpop.xlane.xlu0 %505
  %507 = vadd.xlane.f32.xlu0 %v263
  %v508 = vpop.xlane.xlu0 %507
  %509 = vadd.xlane.f32.xlu0 %v264
  %v510 = vpop.xlane.xlu0 %509
  %511 = vadd.xlane.f32.xlu0 %v265
  %v512 = vpop.xlane.xlu0 %511
  %513 = vadd.xlane.f32.xlu0 %v266
  %v514 = vpop.xlane.xlu0 %513
  %515 = vadd.xlane.f32.xlu0 %v267
  %v516 = vpop.xlane.xlu0 %515
  %517 = vadd.xlane.f32.xlu0 %v268
  %v518 = vpop.xlane.xlu0 %517
  %519 = vadd.xlane.f32.xlu0 %v269
  %v520 = vpop.xlane.xlu0 %519
  %521 = vadd.xlane.f32.xlu0 %v270
  %v522 = vpop.xlane.xlu0 %521
  %523 = vadd.xlane.f32.xlu0 %v271
  %v524 = vpop.xlane.xlu0 %523
  %525 = vadd.xlane.f32.xlu0 %v272
  %v526 = vpop.xlane.xlu0 %525
  %527 = vadd.xlane.f32.xlu0 %v273
  %v528 = vpop.xlane.xlu0 %527
  %529 = vadd.xlane.f32.xlu0 %v274
  %v530 = vpop.xlane.xlu0 %529
  %v531 = vmax.f32 %v276, 1e-24
  %v532 = vmax.f32 %v278, 1e-24
  %v533 = vmax.f32 %v280, 1e-24
  %v534 = vmax.f32 %v282, 1e-24
  %v535 = vmax.f32 %v284, 1e-24
  %v536 = vmax.f32 %v286, 1e-24
  %v537 = vmax.f32 %v288, 1e-24
  %v538 = vmax.f32 %v290, 1e-24
  %v539 = vmax.f32 %v292, 1e-24
  %v540 = vmax.f32 %v294, 1e-24
  %v541 = vmax.f32 %v296, 1e-24
  %v542 = vmax.f32 %v298, 1e-24
  %v543 = vmax.f32 %v300, 1e-24
  %v544 = vmax.f32 %v302, 1e-24
  %v545 = vmax.f32 %v304, 1e-24
  %v546 = vmax.f32 %v306, 1e-24
  %v547 = vmax.f32 %v308, 1e-24
  %v548 = vmax.f32 %v310, 1e-24
  %v549 = vmax.f32 %v312, 1e-24
  %v550 = vmax.f32 %v314, 1e-24
  %v551 = vmax.f32 %v316, 1e-24
  %v552 = vmax.f32 %v318, 1e-24
  %v553 = vmax.f32 %v320, 1e-24
  %v554 = vmax.f32 %v322, 1e-24
  %v555 = vmax.f32 %v324, 1e-24
  %v556 = vmax.f32 %v326, 1e-24
  %v557 = vmax.f32 %v328, 1e-24
  %v558 = vmax.f32 %v330, 1e-24
  %v559 = vmax.f32 %v332, 1e-24
  %v560 = vmax.f32 %v334, 1e-24
  %v561 = vmax.f32 %v336, 1e-24
  %v562 = vmax.f32 %v338, 1e-24
  %v563 = vmax.f32 %v340, 1e-24
  %v564 = vmax.f32 %v342, 1e-24
  %v565 = vmax.f32 %v344, 1e-24
  %v566 = vmax.f32 %v346, 1e-24
  %v567 = vmax.f32 %v348, 1e-24
  %v568 = vmax.f32 %v350, 1e-24
  %v569 = vmax.f32 %v352, 1e-24
  %v570 = vmax.f32 %v354, 1e-24
  %v571 = vmax.f32 %v356, 1e-24
  %v572 = vmax.f32 %v358, 1e-24
  %v573 = vmax.f32 %v360, 1e-24
  %v574 = vmax.f32 %v362, 1e-24
  %v575 = vmax.f32 %v364, 1e-24
  %v576 = vmax.f32 %v366, 1e-24
  %v577 = vmax.f32 %v368, 1e-24
  %v578 = vmax.f32 %v370, 1e-24
  %v579 = vmax.f32 %v372, 1e-24
  %v580 = vmax.f32 %v374, 1e-24
  %v581 = vmax.f32 %v376, 1e-24
  %v582 = vmax.f32 %v378, 1e-24
  %v583 = vmax.f32 %v380, 1e-24
  %v584 = vmax.f32 %v382, 1e-24
  %v585 = vmax.f32 %v384, 1e-24
  %v586 = vmax.f32 %v386, 1e-24
  %v587 = vmax.f32 %v388, 1e-24
  %v588 = vmax.f32 %v390, 1e-24
  %v589 = vmax.f32 %v392, 1e-24
  %v590 = vmax.f32 %v394, 1e-24
  %v591 = vmax.f32 %v396, 1e-24
  %v592 = vmax.f32 %v398, 1e-24
  %v593 = vmax.f32 %v400, 1e-24
  %v594 = vmax.f32 %v402, 1e-24
  %v595 = vmax.f32 %v404, 1e-24
  %v596 = vmax.f32 %v406, 1e-24
  %v597 = vmax.f32 %v408, 1e-24
  %v598 = vmax.f32 %v410, 1e-24
  %v599 = vmax.f32 %v412, 1e-24
  %v600 = vmax.f32 %v414, 1e-24
  %v601 = vmax.f32 %v416, 1e-24
  %v602 = vmax.f32 %v418, 1e-24
  %v603 = vmax.f32 %v420, 1e-24
  %v604 = vmax.f32 %v422, 1e-24
  %v605 = vmax.f32 %v424, 1e-24
  %v606 = vmax.f32 %v426, 1e-24
  %v607 = vmax.f32 %v428, 1e-24
  %v608 = vmax.f32 %v430, 1e-24
  %v609 = vmax.f32 %v432, 1e-24
  %v610 = vmax.f32 %v434, 1e-24
  %v611 = vmax.f32 %v436, 1e-24
  %v612 = vmax.f32 %v438, 1e-24
  %v613 = vmax.f32 %v440, 1e-24
  %v614 = vmax.f32 %v442, 1e-24
  %v615 = vmax.f32 %v444, 1e-24
  %v616 = vmax.f32 %v446, 1e-24
  %v617 = vmax.f32 %v448, 1e-24
  %v618 = vmax.f32 %v450, 1e-24
  %v619 = vmax.f32 %v452, 1e-24
  %v620 = vmax.f32 %v454, 1e-24
  %v621 = vmax.f32 %v456, 1e-24
  %v622 = vmax.f32 %v458, 1e-24
  %v623 = vmax.f32 %v460, 1e-24
  %v624 = vmax.f32 %v462, 1e-24
  %v625 = vmax.f32 %v464, 1e-24
  %v626 = vmax.f32 %v466, 1e-24
  %v627 = vmax.f32 %v468, 1e-24
  %v628 = vmax.f32 %v470, 1e-24
  %v629 = vmax.f32 %v472, 1e-24
  %v630 = vmax.f32 %v474, 1e-24
  %v631 = vmax.f32 %v476, 1e-24
  %v632 = vmax.f32 %v478, 1e-24
  %v633 = vmax.f32 %v480, 1e-24
  %v634 = vmax.f32 %v482, 1e-24
  %v635 = vmax.f32 %v484, 1e-24
  %v636 = vmax.f32 %v486, 1e-24
  %v637 = vmax.f32 %v488, 1e-24
  %v638 = vmax.f32 %v490, 1e-24
  %v639 = vmax.f32 %v492, 1e-24
  %v640 = vmax.f32 %v494, 1e-24
  %v641 = vmax.f32 %v496, 1e-24
  %v642 = vmax.f32 %v498, 1e-24
  %v643 = vmax.f32 %v500, 1e-24
  %v644 = vmax.f32 %v502, 1e-24
  %v645 = vmax.f32 %v504, 1e-24
  %v646 = vmax.f32 %v506, 1e-24
  %v647 = vmax.f32 %v508, 1e-24
  %v648 = vmax.f32 %v510, 1e-24
  %v649 = vmax.f32 %v512, 1e-24
  %v650 = vmax.f32 %v514, 1e-24
  %v651 = vmax.f32 %v516, 1e-24
  %v652 = vmax.f32 %v518, 1e-24
  %v653 = vmax.f32 %v520, 1e-24
  %v654 = vmax.f32 %v522, 1e-24
  %v655 = vmax.f32 %v524, 1e-24
  %v656 = vmax.f32 %v526, 1e-24
  %v657 = vmax.f32 %v528, 1e-24
  %v658 = vmax.f32 %v530, 1e-24
  %v659 = vrsqrt.pop %v531
  %v660 = vrsqrt.pop %v532
  %v661 = vrsqrt.pop %v533
  %v662 = vrsqrt.pop %v534
  %v663 = vrsqrt.pop %v535
  %v664 = vrsqrt.pop %v536
  %v665 = vrsqrt.pop %v537
  %v666 = vrsqrt.pop %v538
  %v667 = vrsqrt.pop %v539
  %v668 = vrsqrt.pop %v540
  %v669 = vrsqrt.pop %v541
  %v670 = vrsqrt.pop %v542
  %v671 = vrsqrt.pop %v543
  %v672 = vrsqrt.pop %v544
  %v673 = vrsqrt.pop %v545
  %v674 = vrsqrt.pop %v546
  %v675 = vrsqrt.pop %v547
  %v676 = vrsqrt.pop %v548
  %v677 = vrsqrt.pop %v549
  %v678 = vrsqrt.pop %v550
  %v679 = vrsqrt.pop %v551
  %v680 = vrsqrt.pop %v552
  %v681 = vrsqrt.pop %v553
  %v682 = vrsqrt.pop %v554
  %v683 = vrsqrt.pop %v555
  %v684 = vrsqrt.pop %v556
  %v685 = vrsqrt.pop %v557
  %v686 = vrsqrt.pop %v558
  %v687 = vrsqrt.pop %v559
  %v688 = vrsqrt.pop %v560
  %v689 = vrsqrt.pop %v561
  %v690 = vrsqrt.pop %v562
  %v691 = vrsqrt.pop %v563
  %v692 = vrsqrt.pop %v564
  %v693 = vrsqrt.pop %v565
  %v694 = vrsqrt.pop %v566
  %v695 = vrsqrt.pop %v567
  %v696 = vrsqrt.pop %v568
  %v697 = vrsqrt.pop %v569
  %v698 = vrsqrt.pop %v570
  %v699 = vrsqrt.pop %v571
  %v700 = vrsqrt.pop %v572
  %v701 = vrsqrt.pop %v573
  %v702 = vrsqrt.pop %v574
  %v703 = vrsqrt.pop %v575
  %v704 = vrsqrt.pop %v576
  %v705 = vrsqrt.pop %v577
  %v706 = vrsqrt.pop %v578
  %v707 = vrsqrt.pop %v579
  %v708 = vrsqrt.pop %v580
  %v709 = vrsqrt.pop %v581
  %v710 = vrsqrt.pop %v582
  %v711 = vrsqrt.pop %v583
  %v712 = vrsqrt.pop %v584
  %v713 = vrsqrt.pop %v585
  %v714 = vrsqrt.pop %v586
  %v715 = vrsqrt.pop %v587
  %v716 = vrsqrt.pop %v588
  %v717 = vrsqrt.pop %v589
  %v718 = vrsqrt.pop %v590
  %v719 = vrsqrt.pop %v591
  %v720 = vrsqrt.pop %v592
  %v721 = vrsqrt.pop %v593
  %v722 = vrsqrt.pop %v594
  %v723 = vrsqrt.pop %v595
  %v724 = vrsqrt.pop %v596
  %v725 = vrsqrt.pop %v597
  %v726 = vrsqrt.pop %v598
  %v727 = vrsqrt.pop %v599
  %v728 = vrsqrt.pop %v600
  %v729 = vrsqrt.pop %v601
  %v730 = vrsqrt.pop %v602
  %v731 = vrsqrt.pop %v603
  %v732 = vrsqrt.pop %v604
  %v733 = vrsqrt.pop %v605
  %v734 = vrsqrt.pop %v606
  %v735 = vrsqrt.pop %v607
  %v736 = vrsqrt.pop %v608
  %v737 = vrsqrt.pop %v609
  %v738 = vrsqrt.pop %v610
  %v739 = vrsqrt.pop %v611
  %v740 = vrsqrt.pop %v612
  %v741 = vrsqrt.pop %v613
  %v742 = vrsqrt.pop %v614
  %v743 = vrsqrt.pop %v615
  %v744 = vrsqrt.pop %v616
  %v745 = vrsqrt.pop %v617
  %v746 = vrsqrt.pop %v618
  %v747 = vrsqrt.pop %v619
  %v748 = vrsqrt.pop %v620
  %v749 = vrsqrt.pop %v621
  %v750 = vrsqrt.pop %v622
  %v751 = vrsqrt.pop %v623
  %v752 = vrsqrt.pop %v624
  %v753 = vrsqrt.pop %v625
  %v754 = vrsqrt.pop %v626
  %v755 = vrsqrt.pop %v627
  %v756 = vrsqrt.pop %v628
  %v757 = vrsqrt.pop %v629
  %v758 = vrsqrt.pop %v630
  %v759 = vrsqrt.pop %v631
  %v760 = vrsqrt.pop %v632
  %v761 = vrsqrt.pop %v633
  %v762 = vrsqrt.pop %v634
  %v763 = vrsqrt.pop %v635
  %v764 = vrsqrt.pop %v636
  %v765 = vrsqrt.pop %v637
  %v766 = vrsqrt.pop %v638
  %v767 = vrsqrt.pop %v639
  %v768 = vrsqrt.pop %v640
  %v769 = vrsqrt.pop %v641
  %v770 = vrsqrt.pop %v642
  %v771 = vrsqrt.pop %v643
  %v772 = vrsqrt.pop %v644
  %v773 = vrsqrt.pop %v645
  %v774 = vrsqrt.pop %v646
  %v775 = vrsqrt.pop %v647
  %v776 = vrsqrt.pop %v648
  %v777 = vrsqrt.pop %v649
  %v778 = vrsqrt.pop %v650
  %v779 = vrsqrt.pop %v651
  %v780 = vrsqrt.pop %v652
  %v781 = vrsqrt.pop %v653
  %v782 = vrsqrt.pop %v654
  %v783 = vrsqrt.pop %v655
  %v784 = vrsqrt.pop %v656
  %v785 = vrsqrt.pop %v657
  %v786 = vrsqrt.pop %v658
  %v787 = vmul.f32 %v19, %v659
  %v788 = vmul.f32 %v20, %v660
  %v789 = vmul.f32 %v21, %v661
  %v790 = vmul.f32 %v22, %v662
  %v791 = vmul.f32 %v23, %v663
  %v792 = vmul.f32 %v24, %v664
  %v793 = vmul.f32 %v25, %v665
  %v794 = vmul.f32 %v26, %v666
  %v795 = vmul.f32 %v27, %v667
  %v796 = vmul.f32 %v28, %v668
  %v797 = vmul.f32 %v29, %v669
  %v798 = vmul.f32 %v30, %v670
  %v799 = vmul.f32 %v31, %v671
  %v800 = vmul.f32 %v32, %v672
  %v801 = vmul.f32 %v33, %v673
  %v802 = vmul.f32 %v34, %v674
  %v803 = vmul.f32 %v35, %v675
  %v804 = vmul.f32 %v36, %v676
  %v805 = vmul.f32 %v37, %v677
  %v806 = vmul.f32 %v38, %v678
  %v807 = vmul.f32 %v39, %v679
  %v808 = vmul.f32 %v40, %v680
  %v809 = vmul.f32 %v41, %v681
  %v810 = vmul.f32 %v42, %v682
  %v811 = vmul.f32 %v43, %v683
  %v812 = vmul.f32 %v44, %v684
  %v813 = vmul.f32 %v45, %v685
  %v814 = vmul.f32 %v46, %v686
  %v815 = vmul.f32 %v47, %v687
  %v816 = vmul.f32 %v48, %v688
  %v817 = vmul.f32 %v49, %v689
  %v818 = vmul.f32 %v50, %v690
  %v819 = vmul.f32 %v51, %v691
  %v820 = vmul.f32 %v52, %v692
  %v821 = vmul.f32 %v53, %v693
  %v822 = vmul.f32 %v54, %v694
  %v823 = vmul.f32 %v55, %v695
  %v824 = vmul.f32 %v56, %v696
  %v825 = vmul.f32 %v57, %v697
  %v826 = vmul.f32 %v58, %v698
  %v827 = vmul.f32 %v59, %v699
  %v828 = vmul.f32 %v60, %v700
  %v829 = vmul.f32 %v61, %v701
  %v830 = vmul.f32 %v62, %v702
  %v831 = vmul.f32 %v63, %v703
  %v832 = vmul.f32 %v64, %v704
  %v833 = vmul.f32 %v65, %v705
  %v834 = vmul.f32 %v66, %v706
  %v835 = vmul.f32 %v67, %v707
  %v836 = vmul.f32 %v68, %v708
  %v837 = vmul.f32 %v69, %v709
  %v838 = vmul.f32 %v70, %v710
  %v839 = vmul.f32 %v71, %v711
  %v840 = vmul.f32 %v72, %v712
  %v841 = vmul.f32 %v73, %v713
  %v842 = vmul.f32 %v74, %v714
  %v843 = vmul.f32 %v75, %v715
  %v844 = vmul.f32 %v76, %v716
  %v845 = vmul.f32 %v77, %v717
  %v846 = vmul.f32 %v78, %v718
  %v847 = vmul.f32 %v79, %v719
  %v848 = vmul.f32 %v80, %v720
  %v849 = vmul.f32 %v81, %v721
  %v850 = vmul.f32 %v82, %v722
  %v851 = vmul.f32 %v83, %v723
  %v852 = vmul.f32 %v84, %v724
  %v853 = vmul.f32 %v85, %v725
  %v854 = vmul.f32 %v86, %v726
  %v855 = vmul.f32 %v87, %v727
  %v856 = vmul.f32 %v88, %v728
  %v857 = vmul.f32 %v89, %v729
  %v858 = vmul.f32 %v90, %v730
  %v859 = vmul.f32 %v91, %v731
  %v860 = vmul.f32 %v92, %v732
  %v861 = vmul.f32 %v93, %v733
  %v862 = vmul.f32 %v94, %v734
  %v863 = vmul.f32 %v95, %v735
  %v864 = vmul.f32 %v96, %v736
  %v865 = vmul.f32 %v97, %v737
  %v866 = vmul.f32 %v98, %v738
  %v867 = vmul.f32 %v99, %v739
  %v868 = vmul.f32 %v100, %v740
  %v869 = vmul.f32 %v101, %v741
  %v870 = vmul.f32 %v102, %v742
  %v871 = vmul.f32 %v103, %v743
  %v872 = vmul.f32 %v104, %v744
  %v873 = vmul.f32 %v105, %v745
  %v874 = vmul.f32 %v106, %v746
  %v875 = vmul.f32 %v107, %v747
  %v876 = vmul.f32 %v108, %v748
  %v877 = vmul.f32 %v109, %v749
  %v878 = vmul.f32 %v110, %v750
  %v879 = vmul.f32 %v111, %v751
  %v880 = vmul.f32 %v112, %v752
  %v881 = vmul.f32 %v113, %v753
  %v882 = vmul.f32 %v114, %v754
  %v883 = vmul.f32 %v115, %v755
  %v884 = vmul.f32 %v116, %v756
  %v885 = vmul.f32 %v117, %v757
  %v886 = vmul.f32 %v118, %v758
  %v887 = vmul.f32 %v119, %v759
  %v888 = vmul.f32 %v120, %v760
  %v889 = vmul.f32 %v121, %v761
  %v890 = vmul.f32 %v122, %v762
  %v891 = vmul.f32 %v123, %v763
  %v892 = vmul.f32 %v124, %v764
  %v893 = vmul.f32 %v125, %v765
  %v894 = vmul.f32 %v126, %v766
  %v895 = vmul.f32 %v127, %v767
  %v896 = vmul.f32 %v128, %v768
  %v897 = vmul.f32 %v129, %v769
  %v898 = vmul.f32 %v130, %v770
  %v899 = vmul.f32 %v131, %v771
  %v900 = vmul.f32 %v132, %v772
  %v901 = vmul.f32 %v133, %v773
  %v902 = vmul.f32 %v134, %v774
  %v903 = vmul.f32 %v135, %v775
  %v904 = vmul.f32 %v136, %v776
  %v905 = vmul.f32 %v137, %v777
  %v906 = vmul.f32 %v138, %v778
  %v907 = vmul.f32 %v139, %v779
  %v908 = vmul.f32 %v140, %v780
  %v909 = vmul.f32 %v141, %v781
  %v910 = vmul.f32 %v142, %v782
  %v911 = vmul.f32 %v143, %v783
  %v912 = vmul.f32 %v144, %v784
  %v913 = vmul.f32 %v145, %v785
  %v914 = vmul.f32 %v146, %v786
  %915 = vmatprep.subr.mxu0 0.0
  %916 = vmatpush1.xpose.msra.mxu0 %v787
  %917 = vmatprep.subr.mxu0 0.0
  %918 = vmatpush1.xpose.msra.mxu0 %v788
  %919 = vmatprep.subr.mxu0 0.0
  %920 = vmatpush1.xpose.msra.mxu0 %v789
  %921 = vmatprep.subr.mxu0 0.0
  %922 = vmatpush1.xpose.msra.mxu0 %v790
  %923 = vmatprep.subr.mxu0 0.0
  %924 = vmatpush1.xpose.msra.mxu0 %v791
  %925 = vmatprep.subr.mxu0 0.0
  %926 = vmatpush1.xpose.msra.mxu0 %v792
  %927 = vmatprep.subr.mxu0 0.0
  %928 = vmatpush1.xpose.msra.mxu0 %v793
  %929 = vmatprep.subr.mxu0 0.0
  %930 = vmatpush1.xpose.msra.mxu0 %v794
  %931 = vmatprep.subr.mxu0 0.0
  %932 = vmatpush1.xpose.msra.mxu0 %v795
  %933 = vmatprep.subr.mxu0 0.0
  %934 = vmatpush1.xpose.msra.mxu0 %v796
  %935 = vmatprep.subr.mxu0 0.0
  %936 = vmatpush1.xpose.msra.mxu0 %v797
  %937 = vmatprep.subr.mxu0 0.0
  %938 = vmatpush1.xpose.msra.mxu0 %v798
  %939 = vmatprep.subr.mxu0 0.0
  %940 = vmatpush1.xpose.msra.mxu0 %v799
  %941 = vmatprep.subr.mxu0 0.0
  %942 = vmatpush1.xpose.msra.mxu0 %v800
  %943 = vmatprep.subr.mxu0 0.0
  %944 = vmatpush1.xpose.msra.mxu0 %v801
  %945 = vmatprep.subr.mxu0 0.0
  %946 = vmatpush1.xpose.msra.mxu0 %v802
  %947 = vmatprep.subr.mxu0 0.0
  %948 = vmatpush1.xpose.msra.mxu0 %v803
  %949 = vmatprep.subr.mxu0 0.0
  %950 = vmatpush1.xpose.msra.mxu0 %v804
  %951 = vmatprep.subr.mxu0 0.0
  %952 = vmatpush1.xpose.msra.mxu0 %v805
  %953 = vmatprep.subr.mxu0 0.0
  %954 = vmatpush1.xpose.msra.mxu0 %v806
  %955 = vmatprep.subr.mxu0 0.0
  %956 = vmatpush1.xpose.msra.mxu0 %v807
  %957 = vmatprep.subr.mxu0 0.0
  %958 = vmatpush1.xpose.msra.mxu0 %v808
  %959 = vmatprep.subr.mxu0 0.0
  %960 = vmatpush1.xpose.msra.mxu0 %v809
  %961 = vmatprep.subr.mxu0 0.0
  %962 = vmatpush1.xpose.msra.mxu0 %v810
  %963 = vmatprep.subr.mxu0 0.0
  %964 = vmatpush1.xpose.msra.mxu0 %v811
  %965 = vmatprep.subr.mxu0 0.0
  %966 = vmatpush1.xpose.msra.mxu0 %v812
  %967 = vmatprep.subr.mxu0 0.0
  %968 = vmatpush1.xpose.msra.mxu0 %v813
  %969 = vmatprep.subr.mxu0 0.0
  %970 = vmatpush1.xpose.msra.mxu0 %v814
  %971 = vmatprep.subr.mxu0 0.0
  %972 = vmatpush1.xpose.msra.mxu0 %v815
  %973 = vmatprep.subr.mxu0 0.0
  %974 = vmatpush1.xpose.msra.mxu0 %v816
  %975 = vmatprep.subr.mxu0 0.0
  %976 = vmatpush1.xpose.msra.mxu0 %v817
  %977 = vmatprep.subr.mxu0 0.0
  %978 = vmatpush1.xpose.msra.mxu0 %v818
  %979 = vmatprep.mubr.f32.mxu0 0.0
  %980 = vmatmul.mubr.f32.gmra.mrb[0].mxu0 %v18
  %v981 = vpop.f32.mrb[0].mxu0
  %v982 = vadd.f32 0.0, %v981
  %v983 = vpop.f32.mrb[0].mxu0
  %v984 = vadd.f32 0.0, %v983
  %985 = vdwg.mxu0
  %986 = vmatprep.subr.mxu0 0.0
  %987 = vmatpush1.xpose.msra.mxu0 %v819
  %988 = vmatprep.subr.mxu0 0.0
  %989 = vmatpush1.xpose.msra.mxu0 %v820
  %990 = vmatprep.subr.mxu0 0.0
  %991 = vmatpush1.xpose.msra.mxu0 %v821
  %992 = vmatprep.subr.mxu0 0.0
  %993 = vmatpush1.xpose.msra.mxu0 %v822
  %994 = vmatprep.subr.mxu0 0.0
  %995 = vmatpush1.xpose.msra.mxu0 %v823
  %996 = vmatprep.subr.mxu0 0.0
  %997 = vmatpush1.xpose.msra.mxu0 %v824
  %998 = vmatprep.subr.mxu0 0.0
  %999 = vmatpush1.xpose.msra.mxu0 %v825
  %1000 = vmatprep.subr.mxu0 0.0
  %1001 = vmatpush1.xpose.msra.mxu0 %v826
  %1002 = vmatprep.subr.mxu0 0.0
  %1003 = vmatpush1.xpose.msra.mxu0 %v827
  %1004 = vmatprep.subr.mxu0 0.0
  %1005 = vmatpush1.xpose.msra.mxu0 %v828
  %1006 = vmatprep.subr.mxu0 0.0
  %1007 = vmatpush1.xpose.msra.mxu0 %v829
  %1008 = vmatprep.subr.mxu0 0.0
  %1009 = vmatpush1.xpose.msra.mxu0 %v830
  %1010 = vmatprep.subr.mxu0 0.0
  %1011 = vmatpush1.xpose.msra.mxu0 %v831
  %1012 = vmatprep.subr.mxu0 0.0
  %1013 = vmatpush1.xpose.msra.mxu0 %v832
  %1014 = vmatprep.subr.mxu0 0.0
  %1015 = vmatpush1.xpose.msra.mxu0 %v833
  %1016 = vmatprep.subr.mxu0 0.0
  %1017 = vmatpush1.xpose.msra.mxu0 %v834
  %1018 = vmatprep.subr.mxu0 0.0
  %1019 = vmatpush1.xpose.msra.mxu0 %v835
  %1020 = vmatprep.subr.mxu0 0.0
  %1021 = vmatpush1.xpose.msra.mxu0 %v836
  %1022 = vmatprep.subr.mxu0 0.0
  %1023 = vmatpush1.xpose.msra.mxu0 %v837
  %1024 = vmatprep.subr.mxu0 0.0
  %1025 = vmatpush1.xpose.msra.mxu0 %v838
  %1026 = vmatprep.subr.mxu0 0.0
  %1027 = vmatpush1.xpose.msra.mxu0 %v839
  %1028 = vmatprep.subr.mxu0 0.0
  %1029 = vmatpush1.xpose.msra.mxu0 %v840
  %1030 = vmatprep.subr.mxu0 0.0
  %1031 = vmatpush1.xpose.msra.mxu0 %v841
  %1032 = vmatprep.subr.mxu0 0.0
  %1033 = vmatpush1.xpose.msra.mxu0 %v842
  %1034 = vmatprep.subr.mxu0 0.0
  %1035 = vmatpush1.xpose.msra.mxu0 %v843
  %1036 = vmatprep.subr.mxu0 0.0
  %1037 = vmatpush1.xpose.msra.mxu0 %v844
  %1038 = vmatprep.subr.mxu0 0.0
  %1039 = vmatpush1.xpose.msra.mxu0 %v845
  %1040 = vmatprep.subr.mxu0 0.0
  %1041 = vmatpush1.xpose.msra.mxu0 %v846
  %1042 = vmatprep.subr.mxu0 0.0
  %1043 = vmatpush1.xpose.msra.mxu0 %v847
  %1044 = vmatprep.subr.mxu0 0.0
  %1045 = vmatpush1.xpose.msra.mxu0 %v848
  %1046 = vmatprep.subr.mxu0 0.0
  %1047 = vmatpush1.xpose.msra.mxu0 %v849
  %1048 = vmatprep.subr.mxu0 0.0
  %1049 = vmatpush1.xpose.msra.mxu0 %v850
  %1050 = vmatprep.mubr.f32.mxu0 0.0
  %1051 = vmatmul.mubr.f32.gmra.mrb[0].mxu0 %v18
  %v1052 = vpop.f32.mrb[0].mxu0
  %v1053 = vadd.f32 0.0, %v1052
  %v1054 = vpop.f32.mrb[0].mxu0
  %v1055 = vadd.f32 0.0, %v1054
  %1056 = vdwg.mxu0
  %1057 = vmatprep.subr.mxu0 0.0
  %1058 = vmatpush1.xpose.msra.mxu0 %v851
  %1059 = vmatprep.subr.mxu0 0.0
  %1060 = vmatpush1.xpose.msra.mxu0 %v852
  %1061 = vmatprep.subr.mxu0 0.0
  %1062 = vmatpush1.xpose.msra.mxu0 %v853
  %1063 = vmatprep.subr.mxu0 0.0
  %1064 = vmatpush1.xpose.msra.mxu0 %v854
  %1065 = vmatprep.subr.mxu0 0.0
  %1066 = vmatpush1.xpose.msra.mxu0 %v855
  %1067 = vmatprep.subr.mxu0 0.0
  %1068 = vmatpush1.xpose.msra.mxu0 %v856
  %1069 = vmatprep.subr.mxu0 0.0
  %1070 = vmatpush1.xpose.msra.mxu0 %v857
  %1071 = vmatprep.subr.mxu0 0.0
  %1072 = vmatpush1.xpose.msra.mxu0 %v858
  %1073 = vmatprep.subr.mxu0 0.0
  %1074 = vmatpush1.xpose.msra.mxu0 %v859
  %1075 = vmatprep.subr.mxu0 0.0
  %1076 = vmatpush1.xpose.msra.mxu0 %v860
  %1077 = vmatprep.subr.mxu0 0.0
  %1078 = vmatpush1.xpose.msra.mxu0 %v861
  %1079 = vmatprep.subr.mxu0 0.0
  %1080 = vmatpush1.xpose.msra.mxu0 %v862
  %1081 = vmatprep.subr.mxu0 0.0
  %1082 = vmatpush1.xpose.msra.mxu0 %v863
  %1083 = vmatprep.subr.mxu0 0.0
  %1084 = vmatpush1.xpose.msra.mxu0 %v864
  %1085 = vmatprep.subr.mxu0 0.0
  %1086 = vmatpush1.xpose.msra.mxu0 %v865
  %1087 = vmatprep.subr.mxu0 0.0
  %1088 = vmatpush1.xpose.msra.mxu0 %v866
  %1089 = vmatprep.subr.mxu0 0.0
  %1090 = vmatpush1.xpose.msra.mxu0 %v867
  %1091 = vmatprep.subr.mxu0 0.0
  %1092 = vmatpush1.xpose.msra.mxu0 %v868
  %1093 = vmatprep.subr.mxu0 0.0
  %1094 = vmatpush1.xpose.msra.mxu0 %v869
  %1095 = vmatprep.subr.mxu0 0.0
  %1096 = vmatpush1.xpose.msra.mxu0 %v870
  %1097 = vmatprep.subr.mxu0 0.0
  %1098 = vmatpush1.xpose.msra.mxu0 %v871
  %1099 = vmatprep.subr.mxu0 0.0
  %1100 = vmatpush1.xpose.msra.mxu0 %v872
  %1101 = vmatprep.subr.mxu0 0.0
  %1102 = vmatpush1.xpose.msra.mxu0 %v873
  %1103 = vmatprep.subr.mxu0 0.0
  %1104 = vmatpush1.xpose.msra.mxu0 %v874
  %1105 = vmatprep.subr.mxu0 0.0
  %1106 = vmatpush1.xpose.msra.mxu0 %v875
  %1107 = vmatprep.subr.mxu0 0.0
  %1108 = vmatpush1.xpose.msra.mxu0 %v876
  %1109 = vmatprep.subr.mxu0 0.0
  %1110 = vmatpush1.xpose.msra.mxu0 %v877
  %1111 = vmatprep.subr.mxu0 0.0
  %1112 = vmatpush1.xpose.msra.mxu0 %v878
  %1113 = vmatprep.subr.mxu0 0.0
  %1114 = vmatpush1.xpose.msra.mxu0 %v879
  %1115 = vmatprep.subr.mxu0 0.0
  %1116 = vmatpush1.xpose.msra.mxu0 %v880
  %1117 = vmatprep.subr.mxu0 0.0
  %1118 = vmatpush1.xpose.msra.mxu0 %v881
  %1119 = vmatprep.subr.mxu0 0.0
  %1120 = vmatpush1.xpose.msra.mxu0 %v882
  %1121 = vmatprep.mubr.f32.mxu0 0.0
  %1122 = vmatmul.mubr.f32.gmra.mrb[0].mxu0 %v18
  %v1123 = vpop.f32.mrb[0].mxu0
  %v1124 = vadd.f32 0.0, %v1123
  %v1125 = vpop.f32.mrb[0].mxu0
  %v1126 = vadd.f32 0.0, %v1125
  %1127 = vdwg.mxu0
  %1128 = vmatprep.subr.mxu0 0.0
  %1129 = vmatpush1.xpose.msra.mxu0 %v883
  %1130 = vmatprep.subr.mxu0 0.0
  %1131 = vmatpush1.xpose.msra.mxu0 %v884
  %1132 = vmatprep.subr.mxu0 0.0
  %1133 = vmatpush1.xpose.msra.mxu0 %v885
  %1134 = vmatprep.subr.mxu0 0.0
  %1135 = vmatpush1.xpose.msra.mxu0 %v886
  %1136 = vmatprep.subr.mxu0 0.0
  %1137 = vmatpush1.xpose.msra.mxu0 %v887
  %1138 = vmatprep.subr.mxu0 0.0
  %1139 = vmatpush1.xpose.msra.mxu0 %v888
  %1140 = vmatprep.subr.mxu0 0.0
  %1141 = vmatpush1.xpose.msra.mxu0 %v889
  %1142 = vmatprep.subr.mxu0 0.0
  %1143 = vmatpush1.xpose.msra.mxu0 %v890
  %1144 = vmatprep.subr.mxu0 0.0
  %1145 = vmatpush1.xpose.msra.mxu0 %v891
  %1146 = vmatprep.subr.mxu0 0.0
  %1147 = vmatpush1.xpose.msra.mxu0 %v892
  %1148 = vmatprep.subr.mxu0 0.0
  %1149 = vmatpush1.xpose.msra.mxu0 %v893
  %1150 = vmatprep.subr.mxu0 0.0
  %1151 = vmatpush1.xpose.msra.mxu0 %v894
  %1152 = vmatprep.subr.mxu0 0.0
  %1153 = vmatpush1.xpose.msra.mxu0 %v895
  %1154 = vmatprep.subr.mxu0 0.0
  %1155 = vmatpush1.xpose.msra.mxu0 %v896
  %1156 = vmatprep.subr.mxu0 0.0
  %1157 = vmatpush1.xpose.msra.mxu0 %v897
  %1158 = vmatprep.subr.mxu0 0.0
  %1159 = vmatpush1.xpose.msra.mxu0 %v898
  %1160 = vmatprep.subr.mxu0 0.0
  %1161 = vmatpush1.xpose.msra.mxu0 %v899
  %1162 = vmatprep.subr.mxu0 0.0
  %1163 = vmatpush1.xpose.msra.mxu0 %v900
  %1164 = vmatprep.subr.mxu0 0.0
  %1165 = vmatpush1.xpose.msra.mxu0 %v901
  %1166 = vmatprep.subr.mxu0 0.0
  %1167 = vmatpush1.xpose.msra.mxu0 %v902
  %1168 = vmatprep.subr.mxu0 0.0
  %1169 = vmatpush1.xpose.msra.mxu0 %v903
  %1170 = vmatprep.subr.mxu0 0.0
  %1171 = vmatpush1.xpose.msra.mxu0 %v904
  %1172 = vmatprep.subr.mxu0 0.0
  %1173 = vmatpush1.xpose.msra.mxu0 %v905
  %1174 = vmatprep.subr.mxu0 0.0
  %1175 = vmatpush1.xpose.msra.mxu0 %v906
  %1176 = vmatprep.subr.mxu0 0.0
  %1177 = vmatpush1.xpose.msra.mxu0 %v907
  %1178 = vmatprep.subr.mxu0 0.0
  %1179 = vmatpush1.xpose.msra.mxu0 %v908
  %1180 = vmatprep.subr.mxu0 0.0
  %1181 = vmatpush1.xpose.msra.mxu0 %v909
  %1182 = vmatprep.subr.mxu0 0.0
  %1183 = vmatpush1.xpose.msra.mxu0 %v910
  %1184 = vmatprep.subr.mxu0 0.0
  %1185 = vmatpush1.xpose.msra.mxu0 %v911
  %1186 = vmatprep.subr.mxu0 0.0
  %1187 = vmatpush1.xpose.msra.mxu0 %v912
  %1188 = vmatprep.subr.mxu0 0.0
  %1189 = vmatpush1.xpose.msra.mxu0 %v913
  %1190 = vmatprep.subr.mxu0 0.0
  %1191 = vmatpush1.xpose.msra.mxu0 %v914
  %1192 = vmatprep.mubr.f32.mxu0 0.0
  %1193 = vmatmul.mubr.f32.gmra.mrb[0].mxu0 %v18
  %v1194 = vpop.f32.mrb[0].mxu0
  %v1195 = vadd.f32 0.0, %v1194
  %v1196 = vpop.f32.mrb[0].mxu0
  %v1197 = vadd.f32 0.0, %v1196
  %1198 = vdwg.mxu0
  %1199 = vst [vmem:[%s2] sm:$0xff] %v982
  %1200 = vst [vmem:[%s2 + $0x8] sm:$0xff] %v984
  %1201 = vst [vmem:[%s2 + $0x10] sm:$0xff] %v1053
  %1202 = vst [vmem:[%s2 + $0x18] sm:$0xff] %v1055
  %1203 = vst [vmem:[%s2 + $0x20] sm:$0xff] %v1124
  %1204 = vst [vmem:[%s2 + $0x28] sm:$0xff] %v1126
  %1205 = vst [vmem:[%s2 + $0x30] sm:$0xff] %v1195
  %1206 = vst [vmem:[%s2 + $0x38] sm:$0xff] %v1197
  // Predicated region
  $region10: #{center_loss_forward.1} parent=0 // pred_check
    _
  $region11: #{center_loss_forward.1} parent=0 // pred_check_branch
    %1208 = sbr.rel (0) target = $region13
  $region12: #{center_loss_forward.1} parent=0 // pred_region
    _
  $region13: #{center_loss_forward.1} parent=0 // pred_fallthru
    _
  // Predicated region
  $region14: #{center_loss_forward.1} parent=0 // pred_check
    _
  $region15: #{center_loss_forward.1} parent=0 // pred_check_branch
    %1210 = sbr.rel (0) target = $region17
  $region16: #{center_loss_forward.1} parent=0 // pred_region
    _
  $region17: #{center_loss_forward.1} parent=0 // pred_fallthru
    _

</llo_original>
